<compile_context>
chip_gen: v5e
topology: v5e:2x2
jax: 0.10.0
libtpu: 0.0.40
codegen_flags: <defaults>
</compile_context>

<pallas_src>
import jax
import jax.numpy as jnp
from jax.experimental import pallas as pl
from jax.experimental.pallas import tpu as pltpu

F32 = jnp.float32
EPS = 1e-5
C_IN = 236          # input channel count (x.view(-1, 236, 1))
K_PAD = 256         # 236 padded up to a full 128-lane multiple


def _lrelu(v):
    return jnp.where(v >= 0, v, 0.2 * v)


def _conv1d_k1(h, W, stride, pad):
    """Conv1d with kernel_size=1 on NCW tensors (reference-exact)."""
    hp = jnp.pad(h, ((0, 0), (0, 0), (pad, pad)))
    taps = hp[:, :, ::stride]
    return jnp.einsum("bcl,oc->bol", taps, W)


def _bn_eval(h, g, b):
    """BatchNorm1d, eval mode, running_mean=0 / running_var=1."""
    return h / jnp.sqrt(1.0 + EPS) * g[None, :, None] + b[None, :, None]


# -----------------------------------------------------------------------------
# Pallas kernel: fused-head per-row dot + sigmoid (memory-bound stream of x).
# -----------------------------------------------------------------------------
def _disc_kernel(x_ref, v_ref, c_ref, o_ref):
    x = x_ref[...]                                                 # (tb, 256)
    v = v_ref[...]                                                 # (1, 256)
    # VPU multiply + XLU lane reduce; MXU would waste 255/256 columns at N=1.
    logit = jnp.sum(x * v, axis=-1, keepdims=True) + c_ref[...]    # (tb, 1)
    o_ref[...] = jax.nn.sigmoid(logit)


def _fused_head_consts(p):
    """Fold the batch-independent `net` branch and both head Linears."""
    # conv1 taps only padding -> its output (and the whole chain) is the same
    # as running the net on a zero input; compute it once, reference-exact.
    h = jnp.zeros((1, C_IN, 1), F32)
    h = _lrelu(_conv1d_k1(h, p["w1"], 2, 1))
    h = _lrelu(_bn_eval(_conv1d_k1(h, p["w2"], 2, 1), p["g2"], p["b2"]))
    h = _lrelu(_bn_eval(_conv1d_k1(h, p["w3"], 2, 1), p["g3"], p["b3"]))
    h = _lrelu(_bn_eval(_conv1d_k1(h, p["w4"], 2, 1), p["g4"], p["b4"]))
    h = _conv1d_k1(h, p["w5"], 1, 0)                   # (1, 256, 2)
    y = h.reshape(512)                                 # nn.Flatten (channel, pos) order

    wa_x = p["wa"][:, :C_IN]                           # (256, 236)
    wa_y = p["wa"][:, C_IN:]                           # (256, 512)
    bias_h = wa_y @ y + p["ba"]                        # (256,) constant head bias
    v = p["wb"] @ wa_x                                 # (1, 236) fused head vector
    c = p["wb"] @ bias_h + p["bb"]                     # (1,)     fused scalar bias
    v_pad = jnp.pad(v.astype(F32), ((0, 0), (0, K_PAD - C_IN)))
    return v_pad, c.reshape(1, 1).astype(F32)


def discriminator_state_forward(x, p, *, tb=256):
    """x: (B, 236) float32  ->  (B, 1) float32."""
    B = x.shape[0]
    # Tile sizing: large tiles amortize the ~0.35us/step overhead and the
    # masked (tb,1) store; cap at ~B/2 (multiple of 8) so the grid keeps >= 2
    # steps for v7x's two TensorCores and small batches aren't over-padded.
    tb = max(8, min(tb, 8 * pl.cdiv(B, 16)))
    Bp = tb * pl.cdiv(B, tb)
    xp = jnp.pad(x.astype(F32), ((0, Bp - B), (0, K_PAD - C_IN)))

    v_pad, c = _fused_head_consts(p)

    out = pl.pallas_call(
        _disc_kernel,
        out_shape=jax.ShapeDtypeStruct((Bp, 1), F32),
        grid_spec=pltpu.PrefetchScalarGridSpec(
            num_scalar_prefetch=0,
            grid=(Bp // tb,),
            in_specs=[
                pl.BlockSpec((tb, K_PAD), lambda i: (i, 0)),   # batch tile of x
                pl.BlockSpec((1, K_PAD), lambda i: (0, 0)),    # fused head vector
                pl.BlockSpec((1, 1), lambda i: (0, 0)),        # fused scalar bias
            ],
            out_specs=pl.BlockSpec((tb, 1), lambda i: (i, 0)),
        ),
        compiler_params=pltpu.CompilerParams(dimension_semantics=("parallel",)),
    )(xp, v_pad, c)
    return out[:B]


def init_params(key):
    ks = jax.random.split(key, 16)

    def w(k, shape, scale=0.05):
        return (scale * jax.random.normal(k, shape)).astype(F32)

    p = {}
    p["w1"] = w(ks[0], (64, 236))     # mathematically unused (taps only padding)
    p["w2"] = w(ks[1], (128, 64))     # mathematically unused (input is all zero)
    p["w3"] = w(ks[2], (256, 128))
    p["w4"] = w(ks[3], (512, 256))
    p["w5"] = w(ks[4], (256, 512))
    # BatchNorm1d affine params (eval-mode running stats assumed 0/1).
    for i, (name, c) in enumerate([("2", 128), ("3", 256), ("4", 512)]):
        p["g" + name] = (1.0 + 0.1 * jax.random.normal(ks[5 + 2 * i], (c,))).astype(F32)
        p["b" + name] = (0.1 * jax.random.normal(ks[6 + 2 * i], (c,))).astype(F32)
    p["wa"] = w(ks[11], (256, 748))   # Linear(512 + 236, 256)
    p["ba"] = w(ks[12], (256,))
    p["wb"] = w(ks[13], (1, 256))     # Linear(256, 1)
    p["bb"] = w(ks[14], (1,))
    return p


def reference_forward(x, p):
    """Pure-JAX reference mirroring the PyTorch module layer-by-layer."""
    B = x.shape[0]
    h = x.reshape(B, C_IN, 1).astype(F32)
    h = _lrelu(_conv1d_k1(h, p["w1"], 2, 1))
    h = _lrelu(_bn_eval(_conv1d_k1(h, p["w2"], 2, 1), p["g2"], p["b2"]))
    h = _lrelu(_bn_eval(_conv1d_k1(h, p["w3"], 2, 1), p["g3"], p["b3"]))
    h = _lrelu(_bn_eval(_conv1d_k1(h, p["w4"], 2, 1), p["g4"], p["b4"]))
    h = _conv1d_k1(h, p["w5"], 1, 0)                    # (B, 256, 2)
    y = h.reshape(B, 512)                               # nn.Flatten / .view(-1, 512)
    res = jnp.concatenate([x.astype(F32), y], axis=1)   # (B, 748)
    res = res @ p["wa"].T + p["ba"]
    res = res @ p["wb"].T + p["bb"]
    return jax.nn.sigmoid(res)


if __name__ == "__main__":
    key = jax.random.PRNGKey(0)
    pkey, xkey = jax.random.split(key)
    params = init_params(pkey)

    x = jax.random.normal(xkey, (8, 236), dtype=F32)    # module sees x.view(-1, 236, 1)

    out = jax.block_until_ready(discriminator_state_forward(x, params))
    ref = jax.block_until_ready(reference_forward(x, params))

    assert out.shape == (8, 1), out.shape
    # Fused head is algebraically exact; only f32 accumulation order differs.
    assert jnp.allclose(out, ref, atol=2e-5, rtol=2e-5), (out, ref)
    print("KERNEL_OK")
</pallas_src>

<mosaic_0001>
module attributes {stable_mosaic.version = 11 : i64} {
  func.func @_disc_kernel(%arg0: i32, %arg1: memref<8x256xf32, #tpu.memory_space<vmem>>, %arg2: memref<1x256xf32, #tpu.memory_space<vmem>>, %arg3: memref<1x1xf32, #tpu.memory_space<vmem>>, %arg4: memref<8x1xf32, #tpu.memory_space<vmem>>) attributes {dimension_semantics = [#tpu.dimension_semantics<parallel>], iteration_bounds = array<i64: 1>, scalar_prefetch = 0 : i64, scratch_operands = 0 : i64, tpu.core_type = #tpu.core_type<tc>, window_params = [{transform_indices = @transform_0, window_bounds = array<i64: 8, 256>}, {pipeline_mode = #tpu.pipeline_mode<synchronous>, transform_indices = @transform_1, window_bounds = array<i64: 1, 256>}, {pipeline_mode = #tpu.pipeline_mode<synchronous>, transform_indices = @transform_2, window_bounds = array<i64: 1, 1>}, {transform_indices = @transform_3, window_bounds = array<i64: 8, 1>}]} {
    %c0 = arith.constant 0 : index
    %c0_0 = arith.constant 0 : index
    %0 = vector.load %arg1[%c0, %c0_0] : memref<8x256xf32, #tpu.memory_space<vmem>>, vector<8x256xf32>
    %c0_1 = arith.constant 0 : index
    %c0_2 = arith.constant 0 : index
    %1 = vector.load %arg2[%c0_1, %c0_2] : memref<1x256xf32, #tpu.memory_space<vmem>>, vector<1x256xf32>
    %2 = vector.broadcast %1 : vector<1x256xf32> to vector<8x256xf32>
    %3 = arith.mulf %0, %2 : vector<8x256xf32>
    %cst = arith.constant dense<0.000000e+00> : vector<8xf32>
    %4 = vector.multi_reduction <add>, %3, %cst [1] : vector<8x256xf32> to vector<8xf32>
    %5 = vector.shape_cast %4 : vector<8xf32> to vector<8x1xf32>
    %c0_3 = arith.constant 0 : index
    %c0_4 = arith.constant 0 : index
    %6 = vector.load %arg3[%c0_3, %c0_4] : memref<1x1xf32, #tpu.memory_space<vmem>>, vector<1x1xf32>
    %7 = vector.broadcast %6 : vector<1x1xf32> to vector<8x1xf32>
    %8 = arith.addf %5, %7 : vector<8x1xf32>
    %9 = arith.negf %8 : vector<8x1xf32>
    %10 = math.exp %9 : vector<8x1xf32>
    %cst_5 = arith.constant 1.000000e+00 : f32
    %11 = vector.broadcast %cst_5 : f32 to vector<8x1xf32>
    %12 = arith.addf %11, %10 : vector<8x1xf32>
    %13 = arith.divf %11, %12 : vector<8x1xf32>
    %c0_6 = arith.constant 0 : index
    %c0_7 = arith.constant 0 : index
    %14 = vector.load %arg4[%c0_6, %c0_7] : memref<8x1xf32, #tpu.memory_space<vmem>>, vector<8x1xf32>
    tpu.vector_store %arg4[%c0_6, %c0_7], %13 {strides = array<i32>} : memref<8x1xf32, #tpu.memory_space<vmem>>, vector<8x1xf32>,
    return
  }
  func.func @transform_0(%arg0: i32) -> (i32, i32) {
    %c0_i32 = arith.constant 0 : i32
    %c0_i32_0 = arith.constant 0 : i32
    return %arg0, %c0_i32 : i32, i32
  }
  func.func @transform_1(%arg0: i32) -> (i32, i32) {
    %c0_i32 = arith.constant 0 : i32
    %c0_i32_0 = arith.constant 0 : i32
    %c0_i32_1 = arith.constant 0 : i32
    return %c0_i32, %c0_i32_0 : i32, i32
  }
  func.func @transform_2(%arg0: i32) -> (i32, i32) {
    %c0_i32 = arith.constant 0 : i32
    %c0_i32_0 = arith.constant 0 : i32
    %c0_i32_1 = arith.constant 0 : i32
    return %c0_i32, %c0_i32_0 : i32, i32
  }
  func.func @transform_3(%arg0: i32) -> (i32, i32) {
    %c0_i32 = arith.constant 0 : i32
    %c0_i32_0 = arith.constant 0 : i32
    return %arg0, %c0_i32 : i32, i32
  }
}

</mosaic_0001>

<llo_original>
// kernel: tpu_custom_call.1
$region0: #{tpu_custom_call.1}
  #allocation0 [shape = 'u32[]', space=smem, size = 0x4, offset = 0x4, fixed_abs, tag = 'smem constant byte address 0x4 - core index']
  #allocation1 [shape = 'u32[72,128]{1,0:T(1,128)}', space=vmem, size = 0x9000, scoped, tag = 'internal scratch']
  #allocation2 [shape = 'f32[1,1]{1,0:T(1,128)S(1)}', space=vmem, size = 0x200, scoped, tag = 'scoped memory for tpu_custom_call.1']
  %s0 = inlined_call_operand.hbm [shape: f32[8,256], index: 0, kind: input, shape index: {}]
  %s1 = inlined_call_operand.vmem [shape: f32[1,256], index: 1, kind: input, shape index: {}]
  %s2 = inlined_call_operand.<no memory space> [shape: f32[1,1], index: 2, kind: input, shape index: {}]
  %s3 = inlined_call_operand.vmem [shape: f32[8,1], index: 3, kind: output, shape index: {}]
  %s4 = sld [smem:[#allocation0]]
  $region26: #{tpu_custom_call.1} parent=0
    _
  %s6 = ssub.s32 1, %s4
  %s7 = scalar_select 0, %s6, %s4
  %v8 = vstv %s2
  %9 = vst [vmem:[#allocation2] sm:$0x1] %v8
  $region1: #{tpu_custom_call.1} parent=0
    #allocation3 [shape = 'u8[8192]{0}', space=vmem, size = 0x2000, scoped, tag = 'input window, operand 0, single buffered']
    #allocation4 [shape = 's32[1]{0}', space=sflag, size = 0x4, scoped, tag = 'scoped memory for tpu_custom_call.1']
    %10 = vsyncpa [#allocation4], 0
    // Predicated region
    $region2: #{tpu_custom_call.1} parent=1 // pred_check
      _
    $region3: #{tpu_custom_call.1} parent=1 // pred_check_branch
      %12 = sbr.rel (0) target = $region5
    $region4: #{tpu_custom_call.1} parent=1 // pred_region
      %14 = vsyncadd [#allocation4], 0
      %s16 = sshll.u32 %s0, 4
      %s17 = int_to_ptr.hbm [resolvable:$true] %s16
      %s18 = sshll.u32 [#allocation3], 4
      %s19 = int_to_ptr.vmem [resolvable:$true] %s18
      %21 = dma.hbm_to_vmem [thread:$0]  %s17, 256, %s19, [#allocation4]
    $region5: #{tpu_custom_call.1} parent=1 // pred_fallthru
      _
    // Predicated region
    $region6: #{tpu_custom_call.1} parent=1 // pred_check
      _
    $region7: #{tpu_custom_call.1} parent=1 // pred_check_branch
      %23 = sbr.rel (0) target = $region9
    $region8: #{tpu_custom_call.1} parent=1 // pred_region
      _
    $region9: #{tpu_custom_call.1} parent=1 // pred_fallthru
      _
    // Predicated region
    $region10: #{tpu_custom_call.1} parent=1 // pred_check
      _
    $region11: #{tpu_custom_call.1} parent=1 // pred_check_branch
      %25 = sbr.rel (0) target = $region13
    $region12: #{tpu_custom_call.1} parent=1 // pred_region
      _
    $region13: #{tpu_custom_call.1} parent=1 // pred_fallthru
      _
    // Predicated region
    $region14: #{tpu_custom_call.1} parent=1 // pred_check
      _
    $region15: #{tpu_custom_call.1} parent=1 // pred_check_branch
      %27 = sbr.rel (0) target = $region17
    $region16: #{tpu_custom_call.1} parent=1 // pred_region
      %29 = dma.done [#allocation4], 256
    $region17: #{tpu_custom_call.1} parent=1 // pred_fallthru
      _
    %v30 = vld [vmem:[#allocation3] sm:$0xff]
    %v31 = vld [vmem:[#allocation3 + $0x8] sm:$0xff]
    %v32 = vld [vmem:[%s1] sm:$0x3]
    %v34 = vperm.slane %v32, 0
    %v35 = vperm.slane %v32, 1
    %v38 = vmul.f32 %v30, %v34
    %v39 = vmul.f32 %v31, %v35
    %v40 = vadd.f32 %v38, %v39
    %41 = vadd.xlane.f32.xlu0 %v40
    %v42 = vpop.xlane.xlu0 %41
    %v43 = vld [vmem:[#allocation2] sm:$0x1]
    %v45 = vperm.slane %v43, 0
    %v47 = vadd.f32 %v42, %v45
    %v48 = vxor.u32 %v47, 2147483648
    %v49 = vmul.f32 %v48, 1.442695
    %v50 = vpow.pop %v49
    %v51 = vadd.f32 %v50, 1.0
    %v52 = vrcp.pop %v51
    %v53 = vmul.f32 %v51, %v52
    %v54 = vsub.f32 1.0, %v53
    %v55 = vmul.f32 %v52, %v54
    %v56 = vadd.f32 %v52, %v55
    %vm57 = vweird.f32 %v51
    %vm58 = vweird.f32 %v52
    %vm59 = vmor %vm57, %vm58
    %v60 = vsel %vm59, %v52, %v56
    %v61 = vand.u32 2147483647, %v51
    %vm62 = vcmp.eq.f32.partialorder %v61, 8.507059e+37
    %v63 = vand.u32 %v51, 2147483648
    %v64 = vor.u32 1.1754944e-38, %v63
    %v65 = vsel %vm62, %v64, %v60
    %v66 = vmul.f32 1.0, %v65
    %vm67 = vcmask 7168
    %68 = vst.msk [vmem:[%s3] sm:$0xff] %vm67, %v66
    // Predicated region
    $region18: #{tpu_custom_call.1} parent=1 // pred_check
      _
    $region19: #{tpu_custom_call.1} parent=1 // pred_check_branch
      %70 = sbr.rel (0) target = $region21
    $region20: #{tpu_custom_call.1} parent=1 // pred_region
      _
    $region21: #{tpu_custom_call.1} parent=1 // pred_fallthru
      _
    // Predicated region
    $region22: #{tpu_custom_call.1} parent=1 // pred_check
      _
    $region23: #{tpu_custom_call.1} parent=1 // pred_check_branch
      %72 = sbr.rel (0) target = $region25
    $region24: #{tpu_custom_call.1} parent=1 // pred_region
      _
    $region25: #{tpu_custom_call.1} parent=1 // pred_fallthru
      _
    %73 = vsyncpa [#allocation4], 1

</llo_original>
